<compile_context>
chip_gen: v6e
topology: v6e:2x2x1
jax: 0.10.0
libtpu: 0.0.40
codegen_flags: <defaults>
</compile_context>

<pallas_src>
import jax
import jax.numpy as jnp
from jax import lax
from jax.experimental import pallas as pl
from jax.experimental.pallas import tpu as pltpu

VMEM_LIMIT = 48 * 1024 * 1024   # safe on v5e/v6e (128 MiB) and v7x (64 MiB / TC)
MAX_SLAB = 1024                 # max spatial positions handled per grid step


# ---------------------------------------------------------------------------
# Fused kernel: gate MLP (1x1 conv -> ReLU -> 1x1 conv -> sigmoid) + gating.
# ---------------------------------------------------------------------------
def _wavattspace_kernel(xg_ref, xs_ref, w1_ref, b1_ref, w2_ref, b2_ref,
                        perm_ref, o_ref):
    # xg_ref : (1, S, th, C)  raw-view slab of x (gate input), rows (w-major, h-minor)
    # xs_ref : (1, C, P)      NCHW slab of x to gate, columns (h-major, w-minor)
    # perm   : (P, P)         constant 0/1 matrix realizing the (w,h)->(h,w) reorder
    _, S, th, C = xg_ref.shape
    P = S * th

    u = xg_ref[...].reshape(P, C).astype(jnp.bfloat16)
    # 1x1 conv #1 (wavelet 2x-LL factor already folded into w1) + bias + ReLU,
    # bf16 operands / f32 MXU accumulation.
    hidden = jnp.maximum(
        jnp.dot(u, w1_ref[...], preferred_element_type=jnp.float32) + b1_ref[...],
        0.0)                                                        # (P, C//2) f32
    # Spatial (w,h)->(h,w) permutation AND transpose-to-channel-major in a single MXU
    # matmul against a constant 0/1 matrix: result[k, p'] = hidden[sigma(p'), k].
    hidden_tp = lax.dot_general(
        hidden.astype(jnp.bfloat16), perm_ref[...],
        dimension_numbers=(((0,), (0,)), ((), ())),
        preferred_element_type=jnp.float32)                         # (C//2, P) f32
    # 1x1 conv #2 + bias + sigmoid, produced directly in (C, spatial) NCHW layout.
    z = jnp.dot(w2_ref[...], hidden_tp.astype(jnp.bfloat16),
                preferred_element_type=jnp.float32) + b2_ref[...]   # (C, P) f32
    gate = jax.nn.sigmoid(z)                                        # f32 epilogue
    # Elementwise gating of the NCHW x slab; lane-dense f32 store.
    o_ref[...] = (xs_ref[...].reshape(C, P) * gate).reshape(1, C, P)


# ---------------------------------------------------------------------------
# Tiling helpers
# ---------------------------------------------------------------------------
def _pick_row_block(S):
    """Output rows handled per grid step.

    Constraints: th divides S and is a multiple of 8 (legal sublane count), the
    per-step spatial slab P = th*S stays bounded (permutation matrix is (P, P)),
    and P is a multiple of 128 (lane-dense stores) where possible.  Prefer
    keeping >= 2 row blocks so the grid has parallelism beyond the batch axis.
    """
    cands = [th for th in range(8, S + 1, 8) if S % th == 0 and th * S <= MAX_SLAB]
    dense = [th for th in cands if (th * S) % 128 == 0]
    dense_multi = [th for th in dense if 2 * th <= S]
    if dense_multi:
        return max(dense_multi)
    if dense:
        return max(dense)
    if cands:
        return max(cands)
    if S * S > 4096:
        raise NotImplementedError(
            "spatial size too large for the permutation-matmul fallback path")
    return S   # full-extent fallback: always a legal BlockSpec


def _perm_matrix(S, th):
    """perm[p, p'] = 1  iff  p == sigma(p').

    Rows p are in raw-view (w-major, h-minor) order, columns p' in NCHW-slab
    (h-major, w-minor) order; exact 0/1 values are representable in bf16.
    """
    P = S * th
    pp = jnp.arange(P)
    hj, wi = pp // S, pp % S
    sigma = wi * th + hj
    return (jnp.arange(P)[:, None] == sigma[None, :]).astype(jnp.bfloat16)


# ---------------------------------------------------------------------------
# Public wrapper
# ---------------------------------------------------------------------------
def waveletattspace(x, params):
    B, C, H, W = x.shape
    assert H == W, "Waveletattspace (as written in PyTorch) requires H == W"
    assert C % 2 == 0, "in_planes must be even (in_planes // 2 hidden channels)"
    S = H
    Ch = params["w1_eff"].shape[1]

    th = _pick_row_block(S)
    P = th * S
    grid = (B, S // th)

    xg = x.reshape(B, S, S, C)      # torch .view(B, H, W, C): raw reinterpretation (free)
    xs = x.reshape(B, C, S * S)     # NCHW with flattened spatial (free)
    perm = _perm_matrix(S, th)

    out = pl.pallas_call(
        _wavattspace_kernel,
        out_shape=jax.ShapeDtypeStruct((B, C, S * S), jnp.float32),
        grid=grid,
        in_specs=[
            pl.BlockSpec((1, S, th, C), lambda b, hb: (b, 0, hb, 0)),  # gate view slab
            pl.BlockSpec((1, C, P), lambda b, hb: (b, 0, hb)),         # NCHW x slab
            pl.BlockSpec((C, Ch), lambda b, hb: (0, 0)),               # w1_eff
            pl.BlockSpec((1, Ch), lambda b, hb: (0, 0)),               # b1
            pl.BlockSpec((C, Ch), lambda b, hb: (0, 0)),               # w2
            pl.BlockSpec((C, 1), lambda b, hb: (0, 0)),                # b2
            pl.BlockSpec((P, P), lambda b, hb: (0, 0)),                # permutation
        ],
        out_specs=pl.BlockSpec((1, C, P), lambda b, hb: (b, 0, hb)),
        compiler_params=pltpu.CompilerParams(
            dimension_semantics=("parallel", "parallel"),
            vmem_limit_bytes=VMEM_LIMIT,
        ),
    )(xg, xs, params["w1_eff"], params["b1_row"], params["w2m"],
      params["b2_col"], perm)
    return out.reshape(B, C, S, S)


# ---------------------------------------------------------------------------
# Parameters (deterministic).  Conv weights stored as (in, out) matmul matrices,
# bf16, with the analytic wavelet simplification folded in.
# ---------------------------------------------------------------------------
def make_params(key, in_planes):
    C, Ch = in_planes, in_planes // 2
    k1, k2, k3, k4 = jax.random.split(key, 4)
    w1 = jax.random.normal(k1, (Ch, 2 * C, 1, 1), jnp.float32) / jnp.sqrt(2.0 * C)
    b1 = 0.05 * jax.random.normal(k2, (Ch,), jnp.float32)
    w2 = jax.random.normal(k3, (C, Ch, 1, 1), jnp.float32) / jnp.sqrt(1.0 * Ch)
    b2 = 0.05 * jax.random.normal(k4, (C,), jnp.float32)
    return {
        # Upsample(2)+haar-DWT gives LL = 2*x and LH=HL=HH = 0, so the zero half of
        # conv1's input channels is dropped and the 2x folded into the weights.
        "w1_eff": (2.0 * w1[:, :C, 0, 0].T).astype(jnp.bfloat16),   # (C, Ch)
        "b1_row": b1.reshape(1, Ch).astype(jnp.float32),
        "w2m": w2[:, :, 0, 0].astype(jnp.bfloat16),                 # (C, Ch)
        "b2_col": b2.reshape(C, 1).astype(jnp.float32),
        # torch-layout originals kept only for the pure-JAX reference check
        "_w1_oihw": w1, "_b1": b1, "_w2_oihw": w2, "_b2": b2,
    }


# ---------------------------------------------------------------------------
# Torch-faithful pure-JAX reference (explicit upsample + haar DWT), f32.
# ---------------------------------------------------------------------------
def waveletattspace_reference(x, w1_oihw, b1, w2_oihw, b2):
    B, C, H, W = x.shape
    v = x.reshape(B, H, W, C)                        # .view(B, H, W, C)
    p = jnp.transpose(v, (0, 3, 2, 1))               # .permute(0, 3, 2, 1)
    up = jnp.repeat(jnp.repeat(p, 2, axis=2), 2, axis=3)   # nn.Upsample(2), nearest
    a = up[:, :, 0::2, 0::2]
    b_ = up[:, :, 0::2, 1::2]
    c_ = up[:, :, 1::2, 0::2]
    d = up[:, :, 1::2, 1::2]
    LL = (a + b_ + c_ + d) / 2.0                     # orthonormal haar
    LH = (-a - b_ + c_ + d) / 2.0                    # exactly zero for a 2x-nearest
    HL = (-a + b_ - c_ + d) / 2.0                    # upsampled input
    HH = (a - b_ - c_ + d) / 2.0
    y0 = jnp.concatenate([LL, LH + HL + HH], axis=1)           # (B, 2C, W, H)
    h1 = jax.nn.relu(jnp.einsum("oi,biwh->bowh", w1_oihw[:, :, 0, 0], y0)
                     + b1[None, :, None, None])
    g = jax.nn.sigmoid(jnp.einsum("oi,biwh->bowh", w2_oihw[:, :, 0, 0], h1)
                       + b2[None, :, None, None])               # (B, C, W, H)
    return x * g                                                 # positional (H == W)


if __name__ == "__main__":
    key = jax.random.PRNGKey(0)
    pkey, xkey = jax.random.split(key)
    # DWAN instantiates Waveletattspace with in_planes=128 (attspace2); small spatial.
    B, C, S = 2, 128, 16
    params = make_params(pkey, C)
    x = jax.random.normal(xkey, (B, C, S, S), jnp.float32)

    out = waveletattspace(x, params)
    out = jax.block_until_ready(out)
    assert out.shape == (B, C, S, S)
    assert bool(jnp.all(jnp.isfinite(out)))

    # Numeric validation of the raw-view / permute index plumbing against the
    # torch-faithful f32 reference (kernel uses bf16 operands -> loose tolerance).
    ref = waveletattspace_reference(x, params["_w1_oihw"], params["_b1"],
                                    params["_w2_oihw"], params["_b2"])
    max_err = float(jnp.max(jnp.abs(out - ref)))
    mean_err = float(jnp.mean(jnp.abs(out - ref)))
    assert max_err < 0.15, f"max abs diff {max_err}"
    assert mean_err < 0.01, f"mean abs diff {mean_err}"
    print("KERNEL_OK")
</pallas_src>

<mosaic_0001>
module attributes {stable_mosaic.version = 11 : i64} {
  func.func @_wavattspace_kernel(%arg0: i32, %arg1: i32, %arg2: memref<1x16x8x128xf32, #tpu.memory_space<vmem>>, %arg3: memref<1x128x128xf32, #tpu.memory_space<vmem>>, %arg4: memref<128x64xbf16, #tpu.memory_space<vmem>>, %arg5: memref<1x64xf32, #tpu.memory_space<vmem>>, %arg6: memref<128x64xbf16, #tpu.memory_space<vmem>>, %arg7: memref<128x1xf32, #tpu.memory_space<vmem>>, %arg8: memref<128x128xbf16, #tpu.memory_space<vmem>>, %arg9: memref<1x128x128xf32, #tpu.memory_space<vmem>>) attributes {dimension_semantics = [#tpu.dimension_semantics<parallel>, #tpu.dimension_semantics<parallel>], iteration_bounds = array<i64: 2, 2>, scalar_prefetch = 0 : i64, scratch_operands = 0 : i64, tpu.core_type = #tpu.core_type<tc>, window_params = [{transform_indices = @transform_0, window_bounds = array<i64: 1, 16, 8, 128>}, {transform_indices = @transform_1, window_bounds = array<i64: 1, 128, 128>}, {pipeline_mode = #tpu.pipeline_mode<synchronous>, transform_indices = @transform_2, window_bounds = array<i64: 128, 64>}, {pipeline_mode = #tpu.pipeline_mode<synchronous>, transform_indices = @transform_3, window_bounds = array<i64: 1, 64>}, {pipeline_mode = #tpu.pipeline_mode<synchronous>, transform_indices = @transform_4, window_bounds = array<i64: 128, 64>}, {pipeline_mode = #tpu.pipeline_mode<synchronous>, transform_indices = @transform_5, window_bounds = array<i64: 128, 1>}, {pipeline_mode = #tpu.pipeline_mode<synchronous>, transform_indices = @transform_6, window_bounds = array<i64: 128, 128>}, {transform_indices = @transform_7, window_bounds = array<i64: 1, 128, 128>}]} {
    %c0 = arith.constant 0 : index
    %c0_0 = arith.constant 0 : index
    %c0_1 = arith.constant 0 : index
    %c0_2 = arith.constant 0 : index
    %0 = vector.load %arg2[%c0, %c0_0, %c0_1, %c0_2] : memref<1x16x8x128xf32, #tpu.memory_space<vmem>>, vector<1x16x8x128xf32>
    %1 = vector.shape_cast %0 : vector<1x16x8x128xf32> to vector<128x128xf32>
    %2 = arith.truncf %1 : vector<128x128xf32> to vector<128x128xbf16>
    %c0_3 = arith.constant 0 : index
    %c0_4 = arith.constant 0 : index
    %3 = vector.load %arg4[%c0_3, %c0_4] : memref<128x64xbf16, #tpu.memory_space<vmem>>, vector<128x64xbf16>
    %cst = arith.constant dense<0.000000e+00> : vector<128x64xf32>
    %4 = tpu.matmul %2, %3, %cst {dimension_numbers = #tpu.dot_dimension_numbers<[1], [0], [0], [1], [0, 0, 1, 1], [], []>} : vector<128x128xbf16>, vector<128x64xbf16>, vector<128x64xf32> -> vector<128x64xf32>
    %c0_5 = arith.constant 0 : index
    %c0_6 = arith.constant 0 : index
    %5 = vector.load %arg5[%c0_5, %c0_6] : memref<1x64xf32, #tpu.memory_space<vmem>>, vector<1x64xf32>
    %6 = vector.broadcast %5 : vector<1x64xf32> to vector<128x64xf32>
    %7 = arith.addf %4, %6 : vector<128x64xf32>
    %cst_7 = arith.constant 0.000000e+00 : f32
    %8 = vector.broadcast %cst_7 : f32 to vector<128x64xf32>
    %9 = arith.maximumf %7, %8 : vector<128x64xf32>
    %10 = arith.truncf %9 : vector<128x64xf32> to vector<128x64xbf16>
    %c0_8 = arith.constant 0 : index
    %c0_9 = arith.constant 0 : index
    %11 = vector.load %arg8[%c0_8, %c0_9] : memref<128x128xbf16, #tpu.memory_space<vmem>>, vector<128x128xbf16>
    %cst_10 = arith.constant dense<0.000000e+00> : vector<64x128xf32>
    %12 = tpu.matmul %10, %11, %cst_10 {dimension_numbers = #tpu.dot_dimension_numbers<[0], [0], [1], [1], [0, 1, 1, 1], [], []>} : vector<128x64xbf16>, vector<128x128xbf16>, vector<64x128xf32> -> vector<64x128xf32>
    %c0_11 = arith.constant 0 : index
    %c0_12 = arith.constant 0 : index
    %13 = vector.load %arg6[%c0_11, %c0_12] : memref<128x64xbf16, #tpu.memory_space<vmem>>, vector<128x64xbf16>
    %14 = arith.truncf %12 : vector<64x128xf32> to vector<64x128xbf16>
    %cst_13 = arith.constant dense<0.000000e+00> : vector<128x128xf32>
    %15 = tpu.matmul %13, %14, %cst_13 {dimension_numbers = #tpu.dot_dimension_numbers<[1], [0], [0], [1], [0, 0, 1, 1], [], []>} : vector<128x64xbf16>, vector<64x128xbf16>, vector<128x128xf32> -> vector<128x128xf32>
    %c0_14 = arith.constant 0 : index
    %c0_15 = arith.constant 0 : index
    %16 = vector.load %arg7[%c0_14, %c0_15] : memref<128x1xf32, #tpu.memory_space<vmem>>, vector<128x1xf32>
    %17 = vector.broadcast %16 : vector<128x1xf32> to vector<128x128xf32>
    %18 = arith.addf %15, %17 : vector<128x128xf32>
    %19 = arith.negf %18 : vector<128x128xf32>
    %20 = math.exp %19 : vector<128x128xf32>
    %cst_16 = arith.constant 1.000000e+00 : f32
    %21 = vector.broadcast %cst_16 : f32 to vector<128x128xf32>
    %22 = arith.addf %21, %20 : vector<128x128xf32>
    %23 = arith.divf %21, %22 : vector<128x128xf32>
    %c0_17 = arith.constant 0 : index
    %c0_18 = arith.constant 0 : index
    %c0_19 = arith.constant 0 : index
    %24 = vector.load %arg3[%c0_17, %c0_18, %c0_19] : memref<1x128x128xf32, #tpu.memory_space<vmem>>, vector<1x128x128xf32>
    %25 = vector.shape_cast %24 : vector<1x128x128xf32> to vector<128x128xf32>
    %26 = arith.mulf %25, %23 : vector<128x128xf32>
    %27 = vector.shape_cast %26 : vector<128x128xf32> to vector<1x128x128xf32>
    %c0_20 = arith.constant 0 : index
    %c0_21 = arith.constant 0 : index
    %c0_22 = arith.constant 0 : index
    %28 = vector.load %arg9[%c0_20, %c0_21, %c0_22] : memref<1x128x128xf32, #tpu.memory_space<vmem>>, vector<1x128x128xf32>
    tpu.vector_store %arg9[%c0_20, %c0_21, %c0_22], %27 {strides = array<i32>} : memref<1x128x128xf32, #tpu.memory_space<vmem>>, vector<1x128x128xf32>,
    return
  }
  func.func @transform_0(%arg0: i32, %arg1: i32) -> (i32, i32, i32, i32) {
    %c0_i32 = arith.constant 0 : i32
    %c0_i32_0 = arith.constant 0 : i32
    %c0_i32_1 = arith.constant 0 : i32
    return %arg0, %c0_i32, %arg1, %c0_i32_0 : i32, i32, i32, i32
  }
  func.func @transform_1(%arg0: i32, %arg1: i32) -> (i32, i32, i32) {
    %c0_i32 = arith.constant 0 : i32
    %c0_i32_0 = arith.constant 0 : i32
    return %arg0, %c0_i32, %arg1 : i32, i32, i32
  }
  func.func @transform_2(%arg0: i32, %arg1: i32) -> (i32, i32) {
    %c0_i32 = arith.constant 0 : i32
    %c0_i32_0 = arith.constant 0 : i32
    %c0_i32_1 = arith.constant 0 : i32
    return %c0_i32, %c0_i32_0 : i32, i32
  }
  func.func @transform_3(%arg0: i32, %arg1: i32) -> (i32, i32) {
    %c0_i32 = arith.constant 0 : i32
    %c0_i32_0 = arith.constant 0 : i32
    %c0_i32_1 = arith.constant 0 : i32
    return %c0_i32, %c0_i32_0 : i32, i32
  }
  func.func @transform_4(%arg0: i32, %arg1: i32) -> (i32, i32) {
    %c0_i32 = arith.constant 0 : i32
    %c0_i32_0 = arith.constant 0 : i32
    %c0_i32_1 = arith.constant 0 : i32
    return %c0_i32, %c0_i32_0 : i32, i32
  }
  func.func @transform_5(%arg0: i32, %arg1: i32) -> (i32, i32) {
    %c0_i32 = arith.constant 0 : i32
    %c0_i32_0 = arith.constant 0 : i32
    %c0_i32_1 = arith.constant 0 : i32
    return %c0_i32, %c0_i32_0 : i32, i32
  }
  func.func @transform_6(%arg0: i32, %arg1: i32) -> (i32, i32) {
    %c0_i32 = arith.constant 0 : i32
    %c0_i32_0 = arith.constant 0 : i32
    %c0_i32_1 = arith.constant 0 : i32
    return %c0_i32, %c0_i32_0 : i32, i32
  }
  func.func @transform_7(%arg0: i32, %arg1: i32) -> (i32, i32, i32) {
    %c0_i32 = arith.constant 0 : i32
    %c0_i32_0 = arith.constant 0 : i32
    return %arg0, %c0_i32, %arg1 : i32, i32, i32
  }
}

</mosaic_0001>

<llo_original>
// kernel: tpu_custom_call.1
$region0: #{tpu_custom_call.1}
  #allocation0 [shape = 'u32[]', space=smem, size = 0x4, offset = 0x4, fixed_abs, tag = 'smem constant byte address 0x4 - core index']
  #allocation1 [shape = 'u32[144,128]{1,0:T(1,128)}', space=vmem, size = 0x12000, scoped, tag = 'internal scratch']
  %s0 = inlined_call_operand.hbm [shape: f32[2,16,16,128], index: 0, kind: input, shape index: {}]
  %s1 = inlined_call_operand.hbm [shape: f32[2,128,256], index: 1, kind: input, shape index: {}]
  %s2 = inlined_call_operand.vmem [shape: bf16[128,64], index: 2, kind: input, shape index: {}]
  %s3 = inlined_call_operand.vmem [shape: f32[1,64], index: 3, kind: input, shape index: {}]
  %s4 = inlined_call_operand.vmem [shape: bf16[128,64], index: 4, kind: input, shape index: {}]
  %s5 = inlined_call_operand.vmem [shape: f32[128,1], index: 5, kind: input, shape index: {}]
  %s6 = inlined_call_operand.vmem [shape: bf16[128,128], index: 6, kind: input, shape index: {}]
  %s7 = inlined_call_operand.hbm [shape: f32[2,128,256], index: 7, kind: output, shape index: {}]
  %s8 = sld [smem:[#allocation0]]
  $region69: #{tpu_custom_call.1} parent=0
    _
  %s10 = ssub.s32 1, %s8
  %s11 = scalar_select 0, %s10, %s8
  $region1: #{tpu_custom_call.1} parent=0
    #allocation2 [shape = 'u8[131072]{0}', space=vmem, size = 0x20000, scoped, tag = 'input window, operand 0']
    #allocation3 [shape = 's32[2]{0}', space=sflag, size = 0x8, scoped, tag = 'scoped memory for tpu_custom_call.1']
    #allocation4 [shape = 's32[2]{0}', space=sflag, size = 0x8, scoped, tag = 'scoped memory for tpu_custom_call.1']
    #allocation5 [shape = 'u8[131072]{0}', space=vmem, size = 0x20000, scoped, tag = 'input window, operand 1']
    #allocation6 [shape = 's32[2]{0}', space=sflag, size = 0x8, scoped, tag = 'scoped memory for tpu_custom_call.1']
    #allocation7 [shape = 'u8[131072]{0}', space=vmem, size = 0x20000, scoped, tag = 'output window, operand 0']
    %12 = vsyncpa [#allocation3], 0
    %s13 = scalar_lea.sflag [#allocation3], 1
    %14 = vsyncpa %s13, 0
    %15 = vsyncpa [#allocation6], 0
    %s16 = scalar_lea.sflag [#allocation6], 1
    %17 = vsyncpa %s16, 0
    %18 = vsyncpa [#allocation4], 0
    %s19 = scalar_lea.sflag [#allocation4], 1
    %20 = vsyncpa %s19, 0
    loop: start=0, step=1, limit=6
    $region2: #{tpu_custom_call.1} parent=1 // loop_pre_header
      _
    $region3: #{tpu_custom_call.1} parent=1 // loop_header
      %s22 = sphi 0, %s26
      %p23 = scmp.ge.s32.totalorder %s22, 6
      %s29 = sphi 0, %s41
      %s30 = sphi 0, %s37
      %s31 = sphi 0, %s29
      %s32 = sphi 0, %s30
      %s33 = sphi 0, %s31
      %s34 = sphi 0, %s32
      %s46 = sphi 0, %s48
      %s49 = sphi 0, %s46
      %s50 = sphi 0, %s49
      %s66 = sphi 0, %s50
      %s74 = sphi 0, %s76
      %s77 = sphi 0, %s74
      %s78 = sphi 0, %s77
      %s94 = sphi 0, %s78
      %s98 = sphi 0, %s98
      %s100 = sphi 0, %s98
      %s101 = sphi 0, %s100
      %s115 = sphi 0, %s101
      %s119 = sphi 0, %s119
      %s121 = sphi 0, %s119
      %s122 = sphi 0, %s121
      %s136 = sphi 0, %s122
      %s140 = sphi 0, %s140
      %s142 = sphi 0, %s140
      %s143 = sphi 0, %s142
      %s157 = sphi 0, %s143
      %s161 = sphi 0, %s161
      %s163 = sphi 0, %s161
      %s164 = sphi 0, %s163
      %s178 = sphi 0, %s164
      %s182 = sphi 0, %s182
      %s184 = sphi 0, %s182
      %s185 = sphi 0, %s184
      %s199 = sphi 0, %s185
      %s207 = sphi 0, %s209
      %s210 = sphi 0, %s207
      %s211 = sphi 0, %s210
      %s227 = sphi 0, %s211
    $region4: #{tpu_custom_call.1} parent=1 // loop_header_branch
      %25 = sbr.rel (%p23) target = $region8
    $region5: #{tpu_custom_call.1} parent=1 // loop_body
      %s27 = ssub.s32 %s22, 1
      %s28 = ssub.s32 %s22, 2
      %s35 = sadd.s32 1, %s30
      %p36 = scmp.ge.s32.totalorder %s35, 2
      %s37 = scalar_select %p36, 0, %s35
      %s38 = sadd.s32 1, %s29
      %s39 = scalar_select %p36, %s38, %s29
      %p40 = scmp.ge.s32.totalorder %s39, 2
      %s41 = scalar_select %p40, 0, %s39
      %s42 = ssub.s32 %s29, %s41
      %s43 = ssub.s32 %s30, %s37
      %s44 = sor.u32 %s42, %s43
      %p45 = scmp.eq.s32.totalorder %s44, 0
      %s47 = sadd.s32 %s46, 1
      %s48 = scalar_select %p45, %s46, %s47
      %p51 = pneg %p45
      %p52 = scmp.eq.s32.totalorder %s22, 3
      %p53 = por %p51, %p52
      %p54 = scmp.ne.s32.totalorder %s46, %s49
      %p55 = scmp.eq.s32.totalorder %s22, 0
      %p56 = por %p54, %p55
      %p57 = scmp.ne.s32.totalorder %s46, %s49
      %p58 = scmp.eq.s32.totalorder %s27, 3
      %p59 = por %p57, %p58
      %p60 = scmp.ne.s32.totalorder %s49, %s50
      %p61 = scmp.eq.s32.totalorder %s27, 0
      %p62 = por %p60, %p61
      %p63 = scmp.ne.s32.totalorder %s49, %s50
      %p64 = scmp.eq.s32.totalorder %s28, 3
      %p65 = por %p63, %p64
      %p67 = scmp.ne.s32.totalorder %s50, %s66
      %p68 = scmp.eq.s32.totalorder %s28, 0
      %p69 = por %p67, %p68
      %s70 = ssub.s32 %s29, %s41
      %s71 = ssub.s32 %s30, %s37
      %s72 = sor.u32 %s70, %s71
      %p73 = scmp.eq.s32.totalorder %s72, 0
      %s75 = sadd.s32 %s74, 1
      %s76 = scalar_select %p73, %s74, %s75
      %p79 = pneg %p73
      %p80 = scmp.eq.s32.totalorder %s22, 3
      %p81 = por %p79, %p80
      %p82 = scmp.ne.s32.totalorder %s74, %s77
      %p83 = scmp.eq.s32.totalorder %s22, 0
      %p84 = por %p82, %p83
      %p85 = scmp.ne.s32.totalorder %s74, %s77
      %p86 = scmp.eq.s32.totalorder %s27, 3
      %p87 = por %p85, %p86
      %p88 = scmp.ne.s32.totalorder %s77, %s78
      %p89 = scmp.eq.s32.totalorder %s27, 0
      %p90 = por %p88, %p89
      %p91 = scmp.ne.s32.totalorder %s77, %s78
      %p92 = scmp.eq.s32.totalorder %s28, 3
      %p93 = por %p91, %p92
      %p95 = scmp.ne.s32.totalorder %s78, %s94
      %p96 = scmp.eq.s32.totalorder %s28, 0
      %p97 = por %p95, %p96
      %s99 = sadd.s32 %s98, 1
      %p102 = scmp.eq.s32.totalorder %s22, 3
      %p103 = scmp.ne.s32.totalorder %s98, %s100
      %p104 = scmp.eq.s32.totalorder %s22, 0
      %p105 = por %p103, %p104
      %p106 = scmp.ne.s32.totalorder %s98, %s100
      %p107 = scmp.eq.s32.totalorder %s27, 3
      %p108 = por %p106, %p107
      %p109 = scmp.ne.s32.totalorder %s100, %s101
      %p110 = scmp.eq.s32.totalorder %s27, 0
      %p111 = por %p109, %p110
      %p112 = scmp.ne.s32.totalorder %s100, %s101
      %p113 = scmp.eq.s32.totalorder %s28, 3
      %p114 = por %p112, %p113
      %p116 = scmp.ne.s32.totalorder %s101, %s115
      %p117 = scmp.eq.s32.totalorder %s28, 0
      %p118 = por %p116, %p117
      %s120 = sadd.s32 %s119, 1
      %p123 = scmp.eq.s32.totalorder %s22, 3
      %p124 = scmp.ne.s32.totalorder %s119, %s121
      %p125 = scmp.eq.s32.totalorder %s22, 0
      %p126 = por %p124, %p125
      %p127 = scmp.ne.s32.totalorder %s119, %s121
      %p128 = scmp.eq.s32.totalorder %s27, 3
      %p129 = por %p127, %p128
      %p130 = scmp.ne.s32.totalorder %s121, %s122
      %p131 = scmp.eq.s32.totalorder %s27, 0
      %p132 = por %p130, %p131
      %p133 = scmp.ne.s32.totalorder %s121, %s122
      %p134 = scmp.eq.s32.totalorder %s28, 3
      %p135 = por %p133, %p134
      %p137 = scmp.ne.s32.totalorder %s122, %s136
      %p138 = scmp.eq.s32.totalorder %s28, 0
      %p139 = por %p137, %p138
      %s141 = sadd.s32 %s140, 1
      %p144 = scmp.eq.s32.totalorder %s22, 3
      %p145 = scmp.ne.s32.totalorder %s140, %s142
      %p146 = scmp.eq.s32.totalorder %s22, 0
      %p147 = por %p145, %p146
      %p148 = scmp.ne.s32.totalorder %s140, %s142
      %p149 = scmp.eq.s32.totalorder %s27, 3
      %p150 = por %p148, %p149
      %p151 = scmp.ne.s32.totalorder %s142, %s143
      %p152 = scmp.eq.s32.totalorder %s27, 0
      %p153 = por %p151, %p152
      %p154 = scmp.ne.s32.totalorder %s142, %s143
      %p155 = scmp.eq.s32.totalorder %s28, 3
      %p156 = por %p154, %p155
      %p158 = scmp.ne.s32.totalorder %s143, %s157
      %p159 = scmp.eq.s32.totalorder %s28, 0
      %p160 = por %p158, %p159
      %s162 = sadd.s32 %s161, 1
      %p165 = scmp.eq.s32.totalorder %s22, 3
      %p166 = scmp.ne.s32.totalorder %s161, %s163
      %p167 = scmp.eq.s32.totalorder %s22, 0
      %p168 = por %p166, %p167
      %p169 = scmp.ne.s32.totalorder %s161, %s163
      %p170 = scmp.eq.s32.totalorder %s27, 3
      %p171 = por %p169, %p170
      %p172 = scmp.ne.s32.totalorder %s163, %s164
      %p173 = scmp.eq.s32.totalorder %s27, 0
      %p174 = por %p172, %p173
      %p175 = scmp.ne.s32.totalorder %s163, %s164
      %p176 = scmp.eq.s32.totalorder %s28, 3
      %p177 = por %p175, %p176
      %p179 = scmp.ne.s32.totalorder %s164, %s178
      %p180 = scmp.eq.s32.totalorder %s28, 0
      %p181 = por %p179, %p180
      %s183 = sadd.s32 %s182, 1
      %p186 = scmp.eq.s32.totalorder %s22, 3
      %p187 = scmp.ne.s32.totalorder %s182, %s184
      %p188 = scmp.eq.s32.totalorder %s22, 0
      %p189 = por %p187, %p188
      %p190 = scmp.ne.s32.totalorder %s182, %s184
      %p191 = scmp.eq.s32.totalorder %s27, 3
      %p192 = por %p190, %p191
      %p193 = scmp.ne.s32.totalorder %s184, %s185
      %p194 = scmp.eq.s32.totalorder %s27, 0
      %p195 = por %p193, %p194
      %p196 = scmp.ne.s32.totalorder %s184, %s185
      %p197 = scmp.eq.s32.totalorder %s28, 3
      %p198 = por %p196, %p197
      %p200 = scmp.ne.s32.totalorder %s185, %s199
      %p201 = scmp.eq.s32.totalorder %s28, 0
      %p202 = por %p200, %p201
      %s203 = ssub.s32 %s29, %s41
      %s204 = ssub.s32 %s30, %s37
      %s205 = sor.u32 %s203, %s204
      %p206 = scmp.eq.s32.totalorder %s205, 0
      %s208 = sadd.s32 %s207, 1
      %s209 = scalar_select %p206, %s207, %s208
      %p212 = pneg %p206
      %p213 = scmp.eq.s32.totalorder %s22, 3
      %p214 = por %p212, %p213
      %p215 = scmp.ne.s32.totalorder %s207, %s210
      %p216 = scmp.eq.s32.totalorder %s22, 0
      %p217 = por %p215, %p216
      %p218 = scmp.ne.s32.totalorder %s207, %s210
      %p219 = scmp.eq.s32.totalorder %s27, 3
      %p220 = por %p218, %p219
      %p221 = scmp.ne.s32.totalorder %s210, %s211
      %p222 = scmp.eq.s32.totalorder %s27, 0
      %p223 = por %p221, %p222
      %p224 = scmp.ne.s32.totalorder %s210, %s211
      %p225 = scmp.eq.s32.totalorder %s28, 3
      %p226 = por %p224, %p225
      %p228 = scmp.ne.s32.totalorder %s211, %s227
      %p229 = scmp.eq.s32.totalorder %s28, 0
      %p230 = por %p228, %p229
      %p231 = scmp.le.s32.totalorder 1, %s22
      %p232 = scmp.lt.s32.totalorder %s22, 5
      %p233 = pnand %p231, %p232
      %p234 = pneg %p233
      // Predicated region
      $region9: #{tpu_custom_call.1} parent=5 // pred_check
        _
      $region10: #{tpu_custom_call.1} parent=5 // pred_check_branch
        %236 = sbr.rel (%p233) target = $region12
      $region11: #{tpu_custom_call.1} parent=5 // pred_region
        %s237 = ssub.s32 %s22, 1
        // Predicated region
        $region13: #{tpu_custom_call.1} parent=11 // pred_check
          %p238 = pneg %p111
        $region14: #{tpu_custom_call.1} parent=11 // pred_check_branch
          %240 = sbr.rel (%p238) target = $region16
        $region15: #{tpu_custom_call.1} parent=11 // pred_region
          _
        $region16: #{tpu_custom_call.1} parent=11 // pred_fallthru
          _
        // Predicated region
        $region17: #{tpu_custom_call.1} parent=11 // pred_check
          %p241 = pneg %p132
        $region18: #{tpu_custom_call.1} parent=11 // pred_check_branch
          %243 = sbr.rel (%p241) target = $region20
        $region19: #{tpu_custom_call.1} parent=11 // pred_region
          _
        $region20: #{tpu_custom_call.1} parent=11 // pred_fallthru
          _
        // Predicated region
        $region21: #{tpu_custom_call.1} parent=11 // pred_check
          %p244 = pneg %p153
        $region22: #{tpu_custom_call.1} parent=11 // pred_check_branch
          %246 = sbr.rel (%p244) target = $region24
        $region23: #{tpu_custom_call.1} parent=11 // pred_region
          _
        $region24: #{tpu_custom_call.1} parent=11 // pred_fallthru
          _
        // Predicated region
        $region25: #{tpu_custom_call.1} parent=11 // pred_check
          %p247 = pneg %p174
        $region26: #{tpu_custom_call.1} parent=11 // pred_check_branch
          %249 = sbr.rel (%p247) target = $region28
        $region27: #{tpu_custom_call.1} parent=11 // pred_region
          _
        $region28: #{tpu_custom_call.1} parent=11 // pred_fallthru
          _
        // Predicated region
        $region29: #{tpu_custom_call.1} parent=11 // pred_check
          %p250 = pneg %p195
        $region30: #{tpu_custom_call.1} parent=11 // pred_check_branch
          %252 = sbr.rel (%p250) target = $region32
        $region31: #{tpu_custom_call.1} parent=11 // pred_region
          _
        $region32: #{tpu_custom_call.1} parent=11 // pred_fallthru
          _
      $region12: #{tpu_custom_call.1} parent=5 // pred_fallthru
        _
      %p253 = scmp.lt.s32.totalorder %s22, 4
      // Predicated region
      $region33: #{tpu_custom_call.1} parent=5 // pred_check
        %p254 = pneg %p253
      $region34: #{tpu_custom_call.1} parent=5 // pred_check_branch
        %256 = sbr.rel (%p254) target = $region36
      $region35: #{tpu_custom_call.1} parent=5 // pred_region
        // Predicated region
        $region37: #{tpu_custom_call.1} parent=35 // pred_check
          %p257 = pneg %p56
        $region38: #{tpu_custom_call.1} parent=35 // pred_check_branch
          %259 = sbr.rel (%p257) target = $region40
        $region39: #{tpu_custom_call.1} parent=35 // pred_region
          %s260 = sand.u32 %s46, 1
          %s261 = scalar_lea.sflag [#allocation3], %s260
          %s262 = sand.u32 %s46, 1
          %s263 = smul.addr %s262, 128
          %s264 = scalar_lea.vmem [#allocation2], %s263
          %s266 = ssub.s32 2048, 2048
          %267 = vsyncadd %s261, %s266
          %s268 = smul.addr %s29, 32
          %s269 = sadd.s32 %s30, %s268
          %s270 = smul.addr %s269, 128
          %s271 = scalar_lea.hbm %s0, %s270
          %s272 = sshll.u32 %s264, 4
          %s273 = int_to_ptr.vmem [resolvable:$true] %s272
          %278 = dma.hbm_to_vmem [thread:$0]  %s271, 2048, %s273, %s261, 256, 128, 8
        $region40: #{tpu_custom_call.1} parent=35 // pred_fallthru
          _
        // Predicated region
        $region41: #{tpu_custom_call.1} parent=35 // pred_check
          %p279 = pneg %p84
        $region42: #{tpu_custom_call.1} parent=35 // pred_check_branch
          %281 = sbr.rel (%p279) target = $region44
        $region43: #{tpu_custom_call.1} parent=35 // pred_region
          %s282 = sand.u32 %s74, 1
          %s283 = scalar_lea.sflag [#allocation6], %s282
          %s284 = sand.u32 %s74, 1
          %s285 = smul.addr %s284, 128
          %s286 = scalar_lea.vmem [#allocation5], %s285
          %s288 = ssub.s32 2048, 2048
          %289 = vsyncadd %s283, %s288
          %s290 = smul.addr %s29, 32
          %s291 = sadd.s32 %s30, %s290
          %s292 = smul.addr %s291, 128
          %s293 = scalar_lea.hbm %s1, %s292
          %s294 = sshll.u32 %s286, 4
          %s295 = int_to_ptr.vmem [resolvable:$true] %s294
          %300 = dma.hbm_to_vmem [thread:$0]  %s293, 2048, %s295, %s283, 256, 128, 8
        $region44: #{tpu_custom_call.1} parent=35 // pred_fallthru
          _
      $region36: #{tpu_custom_call.1} parent=5 // pred_fallthru
        _
      %p301 = scmp.le.s32.totalorder 1, %s22
      %p302 = scmp.lt.s32.totalorder %s22, 5
      %p303 = pnand %p301, %p302
      %p304 = pneg %p303
      // Predicated region
      $region45: #{tpu_custom_call.1} parent=5 // pred_check
        _
      $region46: #{tpu_custom_call.1} parent=5 // pred_check_branch
        %306 = sbr.rel (%p303) target = $region48
      $region47: #{tpu_custom_call.1} parent=5 // pred_region
        %s307 = ssub.s32 %s22, 1
        %s308 = sand.u32 %s49, 1
        %s309 = scalar_lea.sflag [#allocation3], %s308
        %s310 = sand.u32 %s49, 1
        %s311 = smul.addr %s310, 128
        %s312 = scalar_lea.vmem [#allocation2], %s311
        // Predicated region
        $region49: #{tpu_custom_call.1} parent=47 // pred_check
          %p313 = pneg %p62
        $region50: #{tpu_custom_call.1} parent=47 // pred_check_branch
          %315 = sbr.rel (%p313) target = $region52
        $region51: #{tpu_custom_call.1} parent=47 // pred_region
          %316 = dma.done %s309, 2048
        $region52: #{tpu_custom_call.1} parent=47 // pred_fallthru
          _
        %s317 = sand.u32 %s77, 1
        %s318 = scalar_lea.sflag [#allocation6], %s317
        %s319 = sand.u32 %s77, 1
        %s320 = smul.addr %s319, 128
        %s321 = scalar_lea.vmem [#allocation5], %s320
        // Predicated region
        $region53: #{tpu_custom_call.1} parent=47 // pred_check
          %p322 = pneg %p90
        $region54: #{tpu_custom_call.1} parent=47 // pred_check_branch
          %324 = sbr.rel (%p322) target = $region56
        $region55: #{tpu_custom_call.1} parent=47 // pred_region
          %325 = dma.done %s318, 2048
        $region56: #{tpu_custom_call.1} parent=47 // pred_fallthru
          _
        %s326 = sand.u32 %s49, 1
        %s327 = scalar_lea.sflag [#allocation3], %s326
        %s328 = sand.u32 %s49, 1
        %s329 = smul.addr %s328, 128
        %s330 = scalar_lea.vmem [#allocation2], %s329
        %p331 = pneg %p62
        %p332 = pneg %p59
        %s333 = sand.u32 %s77, 1
        %s334 = scalar_lea.sflag [#allocation6], %s333
        %s335 = sand.u32 %s77, 1
        %s336 = smul.addr %s335, 128
        %s337 = scalar_lea.vmem [#allocation5], %s336
        %p338 = pneg %p90
        %p339 = pneg %p87
        %p340 = pneg %p111
        %p341 = pneg %p108
        %p342 = pneg %p132
        %p343 = pneg %p129
        %p344 = pneg %p153
        %p345 = pneg %p150
        %p346 = pneg %p174
        %p347 = pneg %p171
        %p348 = pneg %p195
        %p349 = pneg %p192
        %p350 = pneg %p223
        %p351 = pneg %p220
        %s352 = sand.u32 %s210, 1
        %s353 = scalar_lea.sflag [#allocation4], %s352
        %s354 = sand.u32 %s210, 1
        %s355 = smul.addr %s354, 128
        %s356 = scalar_lea.vmem [#allocation7], %s355
        %v358 = vld [vmem:[%s312] sm:$0xff]
        %v359 = vld [vmem:[%s312 + $0x8] sm:$0xff]
        %v360 = vld [vmem:[%s312 + $0x10] sm:$0xff]
        %v361 = vld [vmem:[%s312 + $0x18] sm:$0xff]
        %v362 = vld [vmem:[%s312 + $0x20] sm:$0xff]
        %v363 = vld [vmem:[%s312 + $0x28] sm:$0xff]
        %v364 = vld [vmem:[%s312 + $0x30] sm:$0xff]
        %v365 = vld [vmem:[%s312 + $0x38] sm:$0xff]
        %v366 = vld [vmem:[%s312 + $0x40] sm:$0xff]
        %v367 = vld [vmem:[%s312 + $0x48] sm:$0xff]
        %v368 = vld [vmem:[%s312 + $0x50] sm:$0xff]
        %v369 = vld [vmem:[%s312 + $0x58] sm:$0xff]
        %v370 = vld [vmem:[%s312 + $0x60] sm:$0xff]
        %v371 = vld [vmem:[%s312 + $0x68] sm:$0xff]
        %v372 = vld [vmem:[%s312 + $0x70] sm:$0xff]
        %v373 = vld [vmem:[%s312 + $0x78] sm:$0xff]
        %v374 = vpack.c.bf16 %v359, %v358
        %v375 = vpack.c.bf16 %v361, %v360
        %v376 = vpack.c.bf16 %v363, %v362
        %v377 = vpack.c.bf16 %v365, %v364
        %v378 = vpack.c.bf16 %v367, %v366
        %v379 = vpack.c.bf16 %v369, %v368
        %v380 = vpack.c.bf16 %v371, %v370
        %v381 = vpack.c.bf16 %v373, %v372
        %v382 = vld [vmem:[%s2] sm:$0xf]
        %v383 = vld [vmem:[%s2 + $0x4] sm:$0xf]
        %v384 = vld [vmem:[%s2 + $0x8] sm:$0xf]
        %v385 = vld [vmem:[%s2 + $0xc] sm:$0xf]
        %v386 = vld [vmem:[%s2 + $0x10] sm:$0xf]
        %v387 = vld [vmem:[%s2 + $0x14] sm:$0xf]
        %v388 = vld [vmem:[%s2 + $0x18] sm:$0xf]
        %v389 = vld [vmem:[%s2 + $0x1c] sm:$0xf]
        %v390 = vld [vmem:[%s2 + $0x20] sm:$0xf]
        %v391 = vld [vmem:[%s2 + $0x24] sm:$0xf]
        %v392 = vld [vmem:[%s2 + $0x28] sm:$0xf]
        %v393 = vld [vmem:[%s2 + $0x2c] sm:$0xf]
        %v394 = vld [vmem:[%s2 + $0x30] sm:$0xf]
        %v395 = vld [vmem:[%s2 + $0x34] sm:$0xf]
        %v396 = vld [vmem:[%s2 + $0x38] sm:$0xf]
        %v397 = vld [vmem:[%s2 + $0x3c] sm:$0xf]
        %v398 = vld [vmem:[%s3] sm:$0x1]
        %v400 = vlaneseq
        %v401 = vshrl.u32 %v400, 7
        %v402 = vsub.s32 0, %v401
        %v403 = vrot.slane %v398, %v402
        %v421 = vunpack.c.l.b16 %v382
        %v422 = vunpack.c.l.b16 %v383
        %v423 = vunpack.c.l.b16 %v384
        %v424 = vunpack.c.l.b16 %v385
        %v425 = vunpack.c.l.b16 %v386
        %v426 = vunpack.c.l.b16 %v387
        %v427 = vunpack.c.l.b16 %v388
        %v428 = vunpack.c.l.b16 %v389
        %v429 = vunpack.c.l.b16 %v390
        %v430 = vunpack.c.l.b16 %v391
        %v431 = vunpack.c.l.b16 %v392
        %v432 = vunpack.c.l.b16 %v393
        %v433 = vunpack.c.l.b16 %v394
        %v434 = vunpack.c.l.b16 %v395
        %v435 = vunpack.c.l.b16 %v396
        %v436 = vunpack.c.l.b16 %v397
        %v437 = vpack.c.b16 %v422, %v421
        %v438 = vpack.c.b16 %v424, %v423
        %v439 = vpack.c.b16 %v426, %v425
        %v440 = vpack.c.b16 %v428, %v427
        %v441 = vpack.c.b16 %v430, %v429
        %v442 = vpack.c.b16 %v432, %v431
        %v443 = vpack.c.b16 %v434, %v433
        %v444 = vpack.c.b16 %v436, %v435
        %453 = vmatprep.subr.bf16.mxu0 0
        %454 = vmatpush1.bf16.msra.mxu0 %v444
        %455 = vmatprep.subr.bf16.mxu0 0
        %456 = vmatpush1.bf16.msra.mxu0 %v443
        %457 = vmatprep.subr.bf16.mxu0 0
        %458 = vmatpush1.bf16.msra.mxu0 %v442
        %459 = vmatprep.subr.bf16.mxu0 0
        %460 = vmatpush1.bf16.msra.mxu0 %v441
        %461 = vmatprep.subr.bf16.mxu0 0
        %462 = vmatpush1.bf16.msra.mxu0 %v440
        %463 = vmatprep.subr.bf16.mxu0 0
        %464 = vmatpush1.bf16.msra.mxu0 %v439
        %465 = vmatprep.subr.bf16.mxu0 0
        %466 = vmatpush1.bf16.msra.mxu0 %v438
        %467 = vmatprep.subr.bf16.mxu0 0
        %468 = vmatpush1.bf16.msra.mxu0 %v437
        %469 = vmatprep.subr.bf16.mxu0 0
        %470 = vmatpush2.bf16.msra.mxu0 0
        %471 = vmatprep.subr.bf16.mxu0 0
        %472 = vmatpush2.bf16.msra.mxu0 0
        %473 = vmatprep.subr.bf16.mxu0 0
        %474 = vmatpush2.bf16.msra.mxu0 0
        %475 = vmatprep.subr.bf16.mxu0 0
        %476 = vmatpush2.bf16.msra.mxu0 0
        %477 = vmatprep.subr.bf16.mxu0 0
        %478 = vmatpush2.bf16.msra.mxu0 0
        %479 = vmatprep.subr.bf16.mxu0 0
        %480 = vmatpush2.bf16.msra.mxu0 0
        %481 = vmatprep.subr.bf16.mxu0 0
        %482 = vmatpush2.bf16.msra.mxu0 0
        %483 = vmatprep.subr.bf16.mxu0 0
        %484 = vmatpush2.bf16.msra.mxu0 0
        %485 = vmatprep.mubr.bf16.mxu0 0
        %486 = vmatmul.mubr.bf16.gmra.mxu0 %v374
        %v487 = vpop.f32.mrf.mxu0
        %v488 = vadd.f32 %v403, %v487
        %v489 = vpop.f32.mrf.mxu0
        %v490 = vpop.f32.mrf.mxu0
        %v491 = vadd.f32 %v403, %v490
        %v492 = vpop.f32.mrf.mxu0
        %493 = vmatprep.mubr.bf16.mxu0 0
        %494 = vmatmul.mubr.bf16.gmra.mxu0 %v375
        %v495 = vpop.f32.mrf.mxu0
        %v496 = vadd.f32 %v403, %v495
        %v497 = vpop.f32.mrf.mxu0
        %v498 = vpop.f32.mrf.mxu0
        %v499 = vadd.f32 %v403, %v498
        %v500 = vpop.f32.mrf.mxu0
        %501 = vmatprep.mubr.bf16.mxu0 0
        %502 = vmatmul.mubr.bf16.gmra.mxu0 %v376
        %v503 = vpop.f32.mrf.mxu0
        %v504 = vadd.f32 %v403, %v503
        %v505 = vpop.f32.mrf.mxu0
        %v506 = vpop.f32.mrf.mxu0
        %v507 = vadd.f32 %v403, %v506
        %v508 = vpop.f32.mrf.mxu0
        %509 = vmatprep.mubr.bf16.mxu0 0
        %510 = vmatmul.mubr.bf16.gmra.mxu0 %v377
        %v511 = vpop.f32.mrf.mxu0
        %v512 = vadd.f32 %v403, %v511
        %v513 = vpop.f32.mrf.mxu0
        %v514 = vpop.f32.mrf.mxu0
        %v515 = vadd.f32 %v403, %v514
        %v516 = vpop.f32.mrf.mxu0
        %517 = vmatprep.mubr.bf16.mxu0 0
        %518 = vmatmul.mubr.bf16.gmra.mxu0 %v378
        %v519 = vpop.f32.mrf.mxu0
        %v520 = vadd.f32 %v403, %v519
        %v521 = vpop.f32.mrf.mxu0
        %v522 = vpop.f32.mrf.mxu0
        %v523 = vadd.f32 %v403, %v522
        %v524 = vpop.f32.mrf.mxu0
        %525 = vmatprep.mubr.bf16.mxu0 0
        %526 = vmatmul.mubr.bf16.gmra.mxu0 %v379
        %v527 = vpop.f32.mrf.mxu0
        %v528 = vadd.f32 %v403, %v527
        %v529 = vpop.f32.mrf.mxu0
        %v530 = vpop.f32.mrf.mxu0
        %v531 = vadd.f32 %v403, %v530
        %v532 = vpop.f32.mrf.mxu0
        %533 = vmatprep.mubr.bf16.mxu0 0
        %534 = vmatmul.mubr.bf16.gmra.mxu0 %v380
        %v535 = vpop.f32.mrf.mxu0
        %v536 = vadd.f32 %v403, %v535
        %v537 = vpop.f32.mrf.mxu0
        %v538 = vpop.f32.mrf.mxu0
        %v539 = vadd.f32 %v403, %v538
        %v540 = vpop.f32.mrf.mxu0
        %541 = vmatprep.mubr.bf16.mxu0 0
        %542 = vmatmul.mubr.bf16.gmra.mxu0 %v381
        %v543 = vpop.f32.mrf.mxu0
        %v544 = vadd.f32 %v403, %v543
        %v545 = vpop.f32.mrf.mxu0
        %v546 = vpop.f32.mrf.mxu0
        %v547 = vadd.f32 %v403, %v546
        %v548 = vpop.f32.mrf.mxu0
        %549 = vdwg.mxu0
        %v550 = vmax.f32 %v488, 0.0
        %v551 = vmax.f32 %v491, 0.0
        %v552 = vmax.f32 %v496, 0.0
        %v553 = vmax.f32 %v499, 0.0
        %v554 = vmax.f32 %v504, 0.0
        %v555 = vmax.f32 %v507, 0.0
        %v556 = vmax.f32 %v512, 0.0
        %v557 = vmax.f32 %v515, 0.0
        %v558 = vmax.f32 %v520, 0.0
        %v559 = vmax.f32 %v523, 0.0
        %v560 = vmax.f32 %v528, 0.0
        %v561 = vmax.f32 %v531, 0.0
        %v562 = vmax.f32 %v536, 0.0
        %v563 = vmax.f32 %v539, 0.0
        %v564 = vmax.f32 %v544, 0.0
        %v565 = vmax.f32 %v547, 0.0
        %v566 = vpack.c.bf16 %v551, %v550
        %v567 = vpack.c.bf16 %v553, %v552
        %v568 = vpack.c.bf16 %v555, %v554
        %v569 = vpack.c.bf16 %v557, %v556
        %v570 = vpack.c.bf16 %v559, %v558
        %v571 = vpack.c.bf16 %v561, %v560
        %v572 = vpack.c.bf16 %v563, %v562
        %v573 = vpack.c.bf16 %v565, %v564
        %v574 = vld [vmem:[%s6] sm:$0xf]
        %v575 = vld [vmem:[%s6 + $0x4] sm:$0xf]
        %v576 = vld [vmem:[%s6 + $0x8] sm:$0xf]
        %v577 = vld [vmem:[%s6 + $0xc] sm:$0xf]
        %v578 = vld [vmem:[%s6 + $0x10] sm:$0xf]
        %v579 = vld [vmem:[%s6 + $0x14] sm:$0xf]
        %v580 = vld [vmem:[%s6 + $0x18] sm:$0xf]
        %v581 = vld [vmem:[%s6 + $0x1c] sm:$0xf]
        %v582 = vld [vmem:[%s6 + $0x20] sm:$0xf]
        %v583 = vld [vmem:[%s6 + $0x24] sm:$0xf]
        %v584 = vld [vmem:[%s6 + $0x28] sm:$0xf]
        %v585 = vld [vmem:[%s6 + $0x2c] sm:$0xf]
        %v586 = vld [vmem:[%s6 + $0x30] sm:$0xf]
        %v587 = vld [vmem:[%s6 + $0x34] sm:$0xf]
        %v588 = vld [vmem:[%s6 + $0x38] sm:$0xf]
        %v589 = vld [vmem:[%s6 + $0x3c] sm:$0xf]
        %590 = vxpose.xlu0.c.b16.start [1/8] %v566, 128
        %591 = vxpose.xlu0.c.b16.cont [2/8] %v567, 128
        %592 = vxpose.xlu0.c.b16.cont [3/8] %v568, 128
        %593 = vxpose.xlu0.c.b16.cont [4/8] %v569, 128
        %594 = vxpose.xlu0.c.b16.cont [5/8] %v570, 128
        %595 = vxpose.xlu0.c.b16.cont [6/8] %v571, 128
        %596 = vxpose.xlu0.c.b16.cont [7/8] %v572, 128
        %597 = vxpose.xlu0.c.b16.end [8/8] %v573, 128
        %v598 = vpop.trf.xlu0
        %v599 = vpop.trf.xlu0
        %v600 = vpop.trf.xlu0
        %v601 = vpop.trf.xlu0
        %v602 = vpop.trf.xlu0
        %v603 = vpop.trf.xlu0
        %v604 = vpop.trf.xlu0
        %v605 = vpop.trf.xlu0
        %v622 = vunpack.c.l.b16 %v574
        %v623 = vunpack.c.l.b16 %v575
        %v624 = vunpack.c.l.b16 %v576
        %v625 = vunpack.c.l.b16 %v577
        %v626 = vunpack.c.l.b16 %v578
        %v627 = vunpack.c.l.b16 %v579
        %v628 = vunpack.c.l.b16 %v580
        %v629 = vunpack.c.l.b16 %v581
        %v630 = vunpack.c.l.b16 %v582
        %v631 = vunpack.c.l.b16 %v583
        %v632 = vunpack.c.l.b16 %v584
        %v633 = vunpack.c.l.b16 %v585
        %v634 = vunpack.c.l.b16 %v586
        %v635 = vunpack.c.l.b16 %v587
        %v636 = vunpack.c.l.b16 %v588
        %v637 = vunpack.c.l.b16 %v589
        %v638 = vpack.c.b16 %v623, %v622
        %v639 = vpack.c.b16 %v625, %v624
        %v640 = vpack.c.b16 %v627, %v626
        %v641 = vpack.c.b16 %v629, %v628
        %v642 = vpack.c.b16 %v631, %v630
        %v643 = vpack.c.b16 %v633, %v632
        %v644 = vpack.c.b16 %v635, %v634
        %v645 = vpack.c.b16 %v637, %v636
        %654 = vmatprep.subr.bf16.mxu0 0
        %655 = vmatpush1.bf16.msra.mxu0 %v645
        %656 = vmatprep.subr.bf16.mxu0 0
        %657 = vmatpush1.bf16.msra.mxu0 %v644
        %658 = vmatprep.subr.bf16.mxu0 0
        %659 = vmatpush1.bf16.msra.mxu0 %v643
        %660 = vmatprep.subr.bf16.mxu0 0
        %661 = vmatpush1.bf16.msra.mxu0 %v642
        %662 = vmatprep.subr.bf16.mxu0 0
        %663 = vmatpush1.bf16.msra.mxu0 %v641
        %664 = vmatprep.subr.bf16.mxu0 0
        %665 = vmatpush1.bf16.msra.mxu0 %v640
        %666 = vmatprep.subr.bf16.mxu0 0
        %667 = vmatpush1.bf16.msra.mxu0 %v639
        %668 = vmatprep.subr.bf16.mxu0 0
        %669 = vmatpush1.bf16.msra.mxu0 %v638
        %670 = vmatprep.subr.bf16.mxu0 0
        %671 = vmatpush2.bf16.msra.mxu0 0
        %672 = vmatprep.subr.bf16.mxu0 0
        %673 = vmatpush2.bf16.msra.mxu0 0
        %674 = vmatprep.subr.bf16.mxu0 0
        %675 = vmatpush2.bf16.msra.mxu0 0
        %676 = vmatprep.subr.bf16.mxu0 0
        %677 = vmatpush2.bf16.msra.mxu0 0
        %678 = vmatprep.subr.bf16.mxu0 0
        %679 = vmatpush2.bf16.msra.mxu0 0
        %680 = vmatprep.subr.bf16.mxu0 0
        %681 = vmatpush2.bf16.msra.mxu0 0
        %682 = vmatprep.subr.bf16.mxu0 0
        %683 = vmatpush2.bf16.msra.mxu0 0
        %684 = vmatprep.subr.bf16.mxu0 0
        %685 = vmatpush2.bf16.msra.mxu0 0
        %686 = vmatprep.mubr.bf16.mxu0 0
        %687 = vmatmul.mubr.bf16.gmra.mxu0 %v598
        %v688 = vpop.f32.mrf.mxu0
        %v689 = vadd.f32 0.0, %v688
        %v690 = vpop.f32.mrf.mxu0
        %v691 = vpop.f32.mrf.mxu0
        %v692 = vadd.f32 0.0, %v691
        %v693 = vpop.f32.mrf.mxu0
        %694 = vmatprep.mubr.bf16.mxu0 0
        %695 = vmatmul.mubr.bf16.gmra.mxu0 %v599
        %v696 = vpop.f32.mrf.mxu0
        %v697 = vadd.f32 0.0, %v696
        %v698 = vpop.f32.mrf.mxu0
        %v699 = vpop.f32.mrf.mxu0
        %v700 = vadd.f32 0.0, %v699
        %v701 = vpop.f32.mrf.mxu0
        %702 = vmatprep.mubr.bf16.mxu0 0
        %703 = vmatmul.mubr.bf16.gmra.mxu0 %v600
        %v704 = vpop.f32.mrf.mxu0
        %v705 = vadd.f32 0.0, %v704
        %v706 = vpop.f32.mrf.mxu0
        %v707 = vpop.f32.mrf.mxu0
        %v708 = vadd.f32 0.0, %v707
        %v709 = vpop.f32.mrf.mxu0
        %710 = vmatprep.mubr.bf16.mxu0 0
        %711 = vmatmul.mubr.bf16.gmra.mxu0 %v601
        %v712 = vpop.f32.mrf.mxu0
        %v713 = vadd.f32 0.0, %v712
        %v714 = vpop.f32.mrf.mxu0
        %v715 = vpop.f32.mrf.mxu0
        %v716 = vadd.f32 0.0, %v715
        %v717 = vpop.f32.mrf.mxu0
        %718 = vdwg.mxu0
        %v719 = vld [vmem:[%s4] sm:$0xf]
        %v720 = vld [vmem:[%s4 + $0x4] sm:$0xf]
        %v721 = vld [vmem:[%s4 + $0x8] sm:$0xf]
        %v722 = vld [vmem:[%s4 + $0xc] sm:$0xf]
        %v723 = vld [vmem:[%s4 + $0x10] sm:$0xf]
        %v724 = vld [vmem:[%s4 + $0x14] sm:$0xf]
        %v725 = vld [vmem:[%s4 + $0x18] sm:$0xf]
        %v726 = vld [vmem:[%s4 + $0x1c] sm:$0xf]
        %v727 = vld [vmem:[%s4 + $0x20] sm:$0xf]
        %v728 = vld [vmem:[%s4 + $0x24] sm:$0xf]
        %v729 = vld [vmem:[%s4 + $0x28] sm:$0xf]
        %v730 = vld [vmem:[%s4 + $0x2c] sm:$0xf]
        %v731 = vld [vmem:[%s4 + $0x30] sm:$0xf]
        %v732 = vld [vmem:[%s4 + $0x34] sm:$0xf]
        %v733 = vld [vmem:[%s4 + $0x38] sm:$0xf]
        %v734 = vld [vmem:[%s4 + $0x3c] sm:$0xf]
        %v735 = vpack.c.bf16 %v692, %v689
        %v736 = vpack.c.bf16 %v700, %v697
        %v737 = vpack.c.bf16 %v708, %v705
        %v738 = vpack.c.bf16 %v716, %v713
        %v739 = vld [vmem:[%s5] sm:$0xff]
        %v740 = vld [vmem:[%s5 + $0x8] sm:$0xff]
        %v741 = vld [vmem:[%s5 + $0x10] sm:$0xff]
        %v742 = vld [vmem:[%s5 + $0x18] sm:$0xff]
        %v743 = vld [vmem:[%s5 + $0x20] sm:$0xff]
        %v744 = vld [vmem:[%s5 + $0x28] sm:$0xff]
        %v745 = vld [vmem:[%s5 + $0x30] sm:$0xff]
        %v746 = vld [vmem:[%s5 + $0x38] sm:$0xff]
        %v747 = vld [vmem:[%s5 + $0x40] sm:$0xff]
        %v748 = vld [vmem:[%s5 + $0x48] sm:$0xff]
        %v749 = vld [vmem:[%s5 + $0x50] sm:$0xff]
        %v750 = vld [vmem:[%s5 + $0x58] sm:$0xff]
        %v751 = vld [vmem:[%s5 + $0x60] sm:$0xff]
        %v752 = vld [vmem:[%s5 + $0x68] sm:$0xff]
        %v753 = vld [vmem:[%s5 + $0x70] sm:$0xff]
        %v754 = vld [vmem:[%s5 + $0x78] sm:$0xff]
        %756 = vset.pattern.permute.xlu0 0
        %757 = vperm.xlu0 %756, %v739
        %v758 = vpop.permute.xlu0 %757
        %761 = vset.pattern.permute.xlu0 0
        %762 = vperm.xlu0 %761, %v740
        %v763 = vpop.permute.xlu0 %762
        %766 = vset.pattern.permute.xlu0 0
        %767 = vperm.xlu0 %766, %v741
        %v768 = vpop.permute.xlu0 %767
        %771 = vset.pattern.permute.xlu0 0
        %772 = vperm.xlu0 %771, %v742
        %v773 = vpop.permute.xlu0 %772
        %776 = vset.pattern.permute.xlu0 0
        %777 = vperm.xlu0 %776, %v743
        %v778 = vpop.permute.xlu0 %777
        %781 = vset.pattern.permute.xlu0 0
        %782 = vperm.xlu0 %781, %v744
        %v783 = vpop.permute.xlu0 %782
        %786 = vset.pattern.permute.xlu0 0
        %787 = vperm.xlu0 %786, %v745
        %v788 = vpop.permute.xlu0 %787
        %791 = vset.pattern.permute.xlu0 0
        %792 = vperm.xlu0 %791, %v746
        %v793 = vpop.permute.xlu0 %792
        %796 = vset.pattern.permute.xlu0 0
        %797 = vperm.xlu0 %796, %v747
        %v798 = vpop.permute.xlu0 %797
        %801 = vset.pattern.permute.xlu0 0
        %802 = vperm.xlu0 %801, %v748
        %v803 = vpop.permute.xlu0 %802
        %806 = vset.pattern.permute.xlu0 0
        %807 = vperm.xlu0 %806, %v749
        %v808 = vpop.permute.xlu0 %807
        %811 = vset.pattern.permute.xlu0 0
        %812 = vperm.xlu0 %811, %v750
        %v813 = vpop.permute.xlu0 %812
        %816 = vset.pattern.permute.xlu0 0
        %817 = vperm.xlu0 %816, %v751
        %v818 = vpop.permute.xlu0 %817
        %821 = vset.pattern.permute.xlu0 0
        %822 = vperm.xlu0 %821, %v752
        %v823 = vpop.permute.xlu0 %822
        %826 = vset.pattern.permute.xlu0 0
        %827 = vperm.xlu0 %826, %v753
        %v828 = vpop.permute.xlu0 %827
        %831 = vset.pattern.permute.xlu0 0
        %832 = vperm.xlu0 %831, %v754
        %v833 = vpop.permute.xlu0 %832
        %v851 = vunpack.c.l.b16 %v719
        %v852 = vunpack.c.l.b16 %v720
        %v853 = vunpack.c.l.b16 %v721
        %v854 = vunpack.c.l.b16 %v722
        %v855 = vunpack.c.l.b16 %v723
        %v856 = vunpack.c.l.b16 %v724
        %v857 = vunpack.c.l.b16 %v725
        %v858 = vunpack.c.l.b16 %v726
        %v859 = vunpack.c.l.b16 %v727
        %v860 = vunpack.c.l.b16 %v728
        %v861 = vunpack.c.l.b16 %v729
        %v862 = vunpack.c.l.b16 %v730
        %v863 = vunpack.c.l.b16 %v731
        %v864 = vunpack.c.l.b16 %v732
        %v865 = vunpack.c.l.b16 %v733
        %v866 = vunpack.c.l.b16 %v734
        %v867 = vpack.c.b16 %v852, %v851
        %v868 = vpack.c.b16 %v854, %v853
        %v869 = vpack.c.b16 %v856, %v855
        %v870 = vpack.c.b16 %v858, %v857
        %v871 = vpack.c.b16 %v860, %v859
        %v872 = vpack.c.b16 %v862, %v861
        %v873 = vpack.c.b16 %v864, %v863
        %v874 = vpack.c.b16 %v866, %v865
        %vm875 = vcmask 523264
        %v877 = vsel %vm875, %v867, 0
        %v880 = vsel %vm875, %v868, 0
        %v883 = vsel %vm875, %v869, 0
        %v886 = vsel %vm875, %v870, 0
        %v889 = vsel %vm875, %v871, 0
        %v892 = vsel %vm875, %v872, 0
        %v895 = vsel %vm875, %v873, 0
        %v898 = vsel %vm875, %v874, 0
        %900 = vmatprep.subr.bf16.mxu0 0
        %901 = vmatpush1.bf16.msra.mxu0 0
        %902 = vmatprep.subr.bf16.mxu0 0
        %903 = vmatpush1.bf16.msra.mxu0 0
        %904 = vmatprep.subr.bf16.mxu0 0
        %905 = vmatpush1.bf16.msra.mxu0 0
        %906 = vmatprep.subr.bf16.mxu0 0
        %907 = vmatpush1.bf16.msra.mxu0 0
        %908 = vmatprep.subr.bf16.mxu0 0
        %909 = vmatpush1.bf16.msra.mxu0 %v738
        %910 = vmatprep.subr.bf16.mxu0 0
        %911 = vmatpush1.bf16.msra.mxu0 %v737
        %912 = vmatprep.subr.bf16.mxu0 0
        %913 = vmatpush1.bf16.msra.mxu0 %v736
        %914 = vmatprep.subr.bf16.mxu0 0
        %915 = vmatpush1.bf16.msra.mxu0 %v735
        %916 = vmatprep.subr.bf16.mxu0 0
        %917 = vmatpush2.bf16.msra.mxu0 0
        %918 = vmatprep.subr.bf16.mxu0 0
        %919 = vmatpush2.bf16.msra.mxu0 0
        %920 = vmatprep.subr.bf16.mxu0 0
        %921 = vmatpush2.bf16.msra.mxu0 0
        %922 = vmatprep.subr.bf16.mxu0 0
        %923 = vmatpush2.bf16.msra.mxu0 0
        %924 = vmatprep.subr.bf16.mxu0 0
        %925 = vmatpush2.bf16.msra.mxu0 0
        %926 = vmatprep.subr.bf16.mxu0 0
        %927 = vmatpush2.bf16.msra.mxu0 0
        %928 = vmatprep.subr.bf16.mxu0 0
        %929 = vmatpush2.bf16.msra.mxu0 0
        %930 = vmatprep.subr.bf16.mxu0 0
        %931 = vmatpush2.bf16.msra.mxu0 0
        %932 = vmatprep.mubr.bf16.mxu0 0
        %933 = vmatmul.mubr.bf16.gmra.mxu0 %v877
        %v934 = vpop.f32.mrf.mxu0
        %v935 = vadd.f32 %v758, %v934
        %v936 = vpop.f32.mrf.mxu0
        %v937 = vpop.f32.mrf.mxu0
        %v938 = vadd.f32 %v763, %v937
        %v939 = vpop.f32.mrf.mxu0
        %940 = vmatprep.mubr.bf16.mxu0 0
        %941 = vmatmul.mubr.bf16.gmra.mxu0 %v880
        %v942 = vpop.f32.mrf.mxu0
        %v943 = vadd.f32 %v768, %v942
        %v944 = vpop.f32.mrf.mxu0
        %v945 = vpop.f32.mrf.mxu0
        %v946 = vadd.f32 %v773, %v945
        %v947 = vpop.f32.mrf.mxu0
        %948 = vmatprep.mubr.bf16.mxu0 0
        %949 = vmatmul.mubr.bf16.gmra.mxu0 %v883
        %v950 = vpop.f32.mrf.mxu0
        %v951 = vadd.f32 %v778, %v950
        %v952 = vpop.f32.mrf.mxu0
        %v953 = vpop.f32.mrf.mxu0
        %v954 = vadd.f32 %v783, %v953
        %v955 = vpop.f32.mrf.mxu0
        %956 = vmatprep.mubr.bf16.mxu0 0
        %957 = vmatmul.mubr.bf16.gmra.mxu0 %v886
        %v958 = vpop.f32.mrf.mxu0
        %v959 = vadd.f32 %v788, %v958
        %v960 = vpop.f32.mrf.mxu0
        %v961 = vpop.f32.mrf.mxu0
        %v962 = vadd.f32 %v793, %v961
        %v963 = vpop.f32.mrf.mxu0
        %964 = vmatprep.mubr.bf16.mxu0 0
        %965 = vmatmul.mubr.bf16.gmra.mxu0 %v889
        %v966 = vpop.f32.mrf.mxu0
        %v967 = vadd.f32 %v798, %v966
        %v968 = vpop.f32.mrf.mxu0
        %v969 = vpop.f32.mrf.mxu0
        %v970 = vadd.f32 %v803, %v969
        %v971 = vpop.f32.mrf.mxu0
        %972 = vmatprep.mubr.bf16.mxu0 0
        %973 = vmatmul.mubr.bf16.gmra.mxu0 %v892
        %v974 = vpop.f32.mrf.mxu0
        %v975 = vadd.f32 %v808, %v974
        %v976 = vpop.f32.mrf.mxu0
        %v977 = vpop.f32.mrf.mxu0
        %v978 = vadd.f32 %v813, %v977
        %v979 = vpop.f32.mrf.mxu0
        %980 = vmatprep.mubr.bf16.mxu0 0
        %981 = vmatmul.mubr.bf16.gmra.mxu0 %v895
        %v982 = vpop.f32.mrf.mxu0
        %v983 = vadd.f32 %v818, %v982
        %v984 = vpop.f32.mrf.mxu0
        %v985 = vpop.f32.mrf.mxu0
        %v986 = vadd.f32 %v823, %v985
        %v987 = vpop.f32.mrf.mxu0
        %988 = vmatprep.mubr.bf16.mxu0 0
        %989 = vmatmul.mubr.bf16.gmra.mxu0 %v898
        %v990 = vpop.f32.mrf.mxu0
        %v991 = vadd.f32 %v828, %v990
        %v992 = vpop.f32.mrf.mxu0
        %v993 = vpop.f32.mrf.mxu0
        %v994 = vadd.f32 %v833, %v993
        %v995 = vpop.f32.mrf.mxu0
        %996 = vdwg.mxu0
        %v997 = vxor.u32 %v935, 2147483648
        %v998 = vxor.u32 %v938, 2147483648
        %v999 = vxor.u32 %v943, 2147483648
        %v1000 = vxor.u32 %v946, 2147483648
        %v1001 = vxor.u32 %v951, 2147483648
        %v1002 = vxor.u32 %v954, 2147483648
        %v1003 = vxor.u32 %v959, 2147483648
        %v1004 = vxor.u32 %v962, 2147483648
        %v1005 = vxor.u32 %v967, 2147483648
        %v1006 = vxor.u32 %v970, 2147483648
        %v1007 = vxor.u32 %v975, 2147483648
        %v1008 = vxor.u32 %v978, 2147483648
        %v1009 = vxor.u32 %v983, 2147483648
        %v1010 = vxor.u32 %v986, 2147483648
        %v1011 = vxor.u32 %v991, 2147483648
        %v1012 = vxor.u32 %v994, 2147483648
        %v1013 = vmul.f32 %v997, 1.442695
        %v1014 = vpow.pop %v1013
        %v1015 = vmul.f32 %v998, 1.442695
        %v1016 = vpow.pop %v1015
        %v1017 = vmul.f32 %v999, 1.442695
        %v1018 = vpow.pop %v1017
        %v1019 = vmul.f32 %v1000, 1.442695
        %v1020 = vpow.pop %v1019
        %v1021 = vmul.f32 %v1001, 1.442695
        %v1022 = vpow.pop %v1021
        %v1023 = vmul.f32 %v1002, 1.442695
        %v1024 = vpow.pop %v1023
        %v1025 = vmul.f32 %v1003, 1.442695
        %v1026 = vpow.pop %v1025
        %v1027 = vmul.f32 %v1004, 1.442695
        %v1028 = vpow.pop %v1027
        %v1029 = vmul.f32 %v1005, 1.442695
        %v1030 = vpow.pop %v1029
        %v1031 = vmul.f32 %v1006, 1.442695
        %v1032 = vpow.pop %v1031
        %v1033 = vmul.f32 %v1007, 1.442695
        %v1034 = vpow.pop %v1033
        %v1035 = vmul.f32 %v1008, 1.442695
        %v1036 = vpow.pop %v1035
        %v1037 = vmul.f32 %v1009, 1.442695
        %v1038 = vpow.pop %v1037
        %v1039 = vmul.f32 %v1010, 1.442695
        %v1040 = vpow.pop %v1039
        %v1041 = vmul.f32 %v1011, 1.442695
        %v1042 = vpow.pop %v1041
        %v1043 = vmul.f32 %v1012, 1.442695
        %v1044 = vpow.pop %v1043
        %v1045 = vadd.f32 %v1014, 1.0
        %v1046 = vadd.f32 %v1016, 1.0
        %v1047 = vadd.f32 %v1018, 1.0
        %v1048 = vadd.f32 %v1020, 1.0
        %v1049 = vadd.f32 %v1022, 1.0
        %v1050 = vadd.f32 %v1024, 1.0
        %v1051 = vadd.f32 %v1026, 1.0
        %v1052 = vadd.f32 %v1028, 1.0
        %v1053 = vadd.f32 %v1030, 1.0
        %v1054 = vadd.f32 %v1032, 1.0
        %v1055 = vadd.f32 %v1034, 1.0
        %v1056 = vadd.f32 %v1036, 1.0
        %v1057 = vadd.f32 %v1038, 1.0
        %v1058 = vadd.f32 %v1040, 1.0
        %v1059 = vadd.f32 %v1042, 1.0
        %v1060 = vadd.f32 %v1044, 1.0
        %v1061 = vrcp.pop %v1045
        %v1062 = vmul.f32 1.0, %v1061
        %v1063 = vrcp.pop %v1046
        %v1064 = vmul.f32 1.0, %v1063
        %v1065 = vrcp.pop %v1047
        %v1066 = vmul.f32 1.0, %v1065
        %v1067 = vrcp.pop %v1048
        %v1068 = vmul.f32 1.0, %v1067
        %v1069 = vrcp.pop %v1049
        %v1070 = vmul.f32 1.0, %v1069
        %v1071 = vrcp.pop %v1050
        %v1072 = vmul.f32 1.0, %v1071
        %v1073 = vrcp.pop %v1051
        %v1074 = vmul.f32 1.0, %v1073
        %v1075 = vrcp.pop %v1052
        %v1076 = vmul.f32 1.0, %v1075
        %v1077 = vrcp.pop %v1053
        %v1078 = vmul.f32 1.0, %v1077
        %v1079 = vrcp.pop %v1054
        %v1080 = vmul.f32 1.0, %v1079
        %v1081 = vrcp.pop %v1055
        %v1082 = vmul.f32 1.0, %v1081
        %v1083 = vrcp.pop %v1056
        %v1084 = vmul.f32 1.0, %v1083
        %v1085 = vrcp.pop %v1057
        %v1086 = vmul.f32 1.0, %v1085
        %v1087 = vrcp.pop %v1058
        %v1088 = vmul.f32 1.0, %v1087
        %v1089 = vrcp.pop %v1059
        %v1090 = vmul.f32 1.0, %v1089
        %v1091 = vrcp.pop %v1060
        %v1092 = vmul.f32 1.0, %v1091
        %v1093 = vld [vmem:[%s321] sm:$0xff]
        %v1094 = vld [vmem:[%s321 + $0x8] sm:$0xff]
        %v1095 = vld [vmem:[%s321 + $0x10] sm:$0xff]
        %v1096 = vld [vmem:[%s321 + $0x18] sm:$0xff]
        %v1097 = vld [vmem:[%s321 + $0x20] sm:$0xff]
        %v1098 = vld [vmem:[%s321 + $0x28] sm:$0xff]
        %v1099 = vld [vmem:[%s321 + $0x30] sm:$0xff]
        %v1100 = vld [vmem:[%s321 + $0x38] sm:$0xff]
        %v1101 = vld [vmem:[%s321 + $0x40] sm:$0xff]
        %v1102 = vld [vmem:[%s321 + $0x48] sm:$0xff]
        %v1103 = vld [vmem:[%s321 + $0x50] sm:$0xff]
        %v1104 = vld [vmem:[%s321 + $0x58] sm:$0xff]
        %v1105 = vld [vmem:[%s321 + $0x60] sm:$0xff]
        %v1106 = vld [vmem:[%s321 + $0x68] sm:$0xff]
        %v1107 = vld [vmem:[%s321 + $0x70] sm:$0xff]
        %v1108 = vld [vmem:[%s321 + $0x78] sm:$0xff]
        %v1109 = vmul.f32 %v1093, %v1062
        %v1110 = vmul.f32 %v1094, %v1064
        %v1111 = vmul.f32 %v1095, %v1066
        %v1112 = vmul.f32 %v1096, %v1068
        %v1113 = vmul.f32 %v1097, %v1070
        %v1114 = vmul.f32 %v1098, %v1072
        %v1115 = vmul.f32 %v1099, %v1074
        %v1116 = vmul.f32 %v1100, %v1076
        %v1117 = vmul.f32 %v1101, %v1078
        %v1118 = vmul.f32 %v1102, %v1080
        %v1119 = vmul.f32 %v1103, %v1082
        %v1120 = vmul.f32 %v1104, %v1084
        %v1121 = vmul.f32 %v1105, %v1086
        %v1122 = vmul.f32 %v1106, %v1088
        %v1123 = vmul.f32 %v1107, %v1090
        %v1124 = vmul.f32 %v1108, %v1092
        %1125 = vst [vmem:[%s356] sm:$0xff] %v1109
        %1126 = vst [vmem:[%s356 + $0x8] sm:$0xff] %v1110
        %1127 = vst [vmem:[%s356 + $0x10] sm:$0xff] %v1111
        %1128 = vst [vmem:[%s356 + $0x18] sm:$0xff] %v1112
        %1129 = vst [vmem:[%s356 + $0x20] sm:$0xff] %v1113
        %1130 = vst [vmem:[%s356 + $0x28] sm:$0xff] %v1114
        %1131 = vst [vmem:[%s356 + $0x30] sm:$0xff] %v1115
        %1132 = vst [vmem:[%s356 + $0x38] sm:$0xff] %v1116
        %1133 = vst [vmem:[%s356 + $0x40] sm:$0xff] %v1117
        %1134 = vst [vmem:[%s356 + $0x48] sm:$0xff] %v1118
        %1135 = vst [vmem:[%s356 + $0x50] sm:$0xff] %v1119
        %1136 = vst [vmem:[%s356 + $0x58] sm:$0xff] %v1120
        %1137 = vst [vmem:[%s356 + $0x60] sm:$0xff] %v1121
        %1138 = vst [vmem:[%s356 + $0x68] sm:$0xff] %v1122
        %1139 = vst [vmem:[%s356 + $0x70] sm:$0xff] %v1123
        %1140 = vst [vmem:[%s356 + $0x78] sm:$0xff] %v1124
        %s1141 = sand.u32 %s210, 1
        %s1142 = scalar_lea.sflag [#allocation4], %s1141
        %s1143 = sand.u32 %s210, 1
        %s1144 = smul.addr %s1143, 128
        %s1145 = scalar_lea.vmem [#allocation7], %s1144
        // Predicated region
        $region57: #{tpu_custom_call.1} parent=47 // pred_check
          %p1146 = pneg %p220
        $region58: #{tpu_custom_call.1} parent=47 // pred_check_branch
          %1148 = sbr.rel (%p1146) target = $region60
        $region59: #{tpu_custom_call.1} parent=47 // pred_region
          %s1150 = ssub.s32 2048, 2048
          %1151 = vsyncadd %s1142, %s1150
          %s1152 = smul.addr %s31, 32
          %s1153 = sadd.s32 %s32, %s1152
          %s1154 = smul.addr %s1153, 128
          %s1155 = scalar_lea.hbm %s7, %s1154
          %s1156 = sshll.u32 %s1145, 4
          %s1157 = int_to_ptr.vmem [resolvable:$true] %s1156
          %1162 = dma.vmem_to_hbm [thread:$0]  %s1157, 2048, %s1155, %s1142, 128, 256, 8
        $region60: #{tpu_custom_call.1} parent=47 // pred_fallthru
          _
      $region48: #{tpu_custom_call.1} parent=5 // pred_fallthru
        _
      %p1163 = scmp.le.s32.totalorder 2, %s22
      // Predicated region
      $region61: #{tpu_custom_call.1} parent=5 // pred_check
        %p1164 = pneg %p1163
      $region62: #{tpu_custom_call.1} parent=5 // pred_check_branch
        %1166 = sbr.rel (%p1164) target = $region64
      $region63: #{tpu_custom_call.1} parent=5 // pred_region
        %s1167 = ssub.s32 %s22, 2
        // Predicated region
        $region65: #{tpu_custom_call.1} parent=63 // pred_check
          %p1168 = pneg %p226
        $region66: #{tpu_custom_call.1} parent=63 // pred_check_branch
          %1170 = sbr.rel (%p1168) target = $region68
        $region67: #{tpu_custom_call.1} parent=63 // pred_region
          %s1171 = sand.u32 %s211, 1
          %s1172 = scalar_lea.sflag [#allocation4], %s1171
          %s1173 = sand.u32 %s211, 1
          %s1174 = smul.addr %s1173, 128
          %s1175 = scalar_lea.vmem [#allocation7], %s1174
          %1176 = dma.done %s1172, 2048
        $region68: #{tpu_custom_call.1} parent=63 // pred_fallthru
          _
      $region64: #{tpu_custom_call.1} parent=5 // pred_fallthru
        _
    $region6: #{tpu_custom_call.1} parent=1 // loop_footer
      %s26 = sadd.s32 1, %s22
    $region7: #{tpu_custom_call.1} parent=1 // loop_footer_branch
      %21 = sbr.rel target = $region3
    $region8: #{tpu_custom_call.1} parent=1 // loop_exit
      _
    %1177 = vsyncpa [#allocation3], 1
    %s1178 = scalar_lea.sflag [#allocation3], 1
    %1179 = vsyncpa %s1178, 1
    %1180 = vsyncpa [#allocation6], 1
    %s1181 = scalar_lea.sflag [#allocation6], 1
    %1182 = vsyncpa %s1181, 1
    %1183 = vsyncpa [#allocation4], 1
    %s1184 = scalar_lea.sflag [#allocation4], 1
    %1185 = vsyncpa %s1184, 1

</llo_original>
